<compile_context>
chip_gen: v6e
topology: v6e:2x2x1
jax: 0.10.0
libtpu: 0.0.40
codegen_flags: <defaults>
</compile_context>

<pallas_src>
import jax
import jax.numpy as jnp
from jax.experimental import pallas as pl
from jax.experimental.pallas import tpu as pltpu

_LANES = 128
_TARGET_BLOCK_BYTES = 4 * 1024 * 1024    # ~4 MiB per block; x4 buffers ~= 16 MiB VMEM
_VMEM_LIMIT_BYTES = 32 * 1024 * 1024     # safe on v5e/v6e/v7x
_UNALIGNED_LANE_TILE = 64 * 1024         # lanes per block for the rare unaligned path


def _copy_kernel(x_ref, o_ref):
    # Identity copy of the current VMEM tile (pure mem-bound vld -> vst).
    o_ref[...] = x_ref[...]


def _sublane_pack(dtype):
    """Native sublane packing: 8 for 32-bit, 16 for 16-bit, 32 for 8-bit dtypes."""
    itemsize = jnp.dtype(dtype).itemsize
    return max(8, 32 // max(itemsize, 1))


def _round_up(n, m):
    return ((n + m - 1) // m) * m


def _resolve_shape(shape, total):
    """Replicate torch.view's -1 inference."""
    shape = list(shape)
    neg = [i for i, s in enumerate(shape) if s == -1]
    if len(neg) > 1:
        raise ValueError("only one dimension can be -1")
    if neg:
        known = 1
        for s in shape:
            if s != -1:
                known *= s
        if known == 0 or total % known != 0:
            raise ValueError(f"cannot view {total} elements as {tuple(shape)}")
        shape[neg[0]] = total // known
    prod = 1
    for s in shape:
        prod *= s
    if prod != total:
        raise ValueError(f"shape {tuple(shape)} invalid for {total} elements")
    return tuple(shape)


def pallas_reshape(x, shape, *, row_tile=None):
    """Equivalent of torch `x.view(shape)`; the byte copy is a Pallas kernel."""
    total = x.size
    out_shape = _resolve_shape(shape, total)
    if total == 0:
        # Empty tensor: nothing to copy.
        return jnp.reshape(x, out_shape)

    flat = x.reshape(-1)  # metadata-only for a contiguous C-order array
    itemsize = jnp.dtype(x.dtype).itemsize
    pack = _sublane_pack(x.dtype)

    if total % _LANES == 0:
        # Fast path: view the stream as a (rows, 128) lane-dense slab.
        rows = total // _LANES
        if row_tile is None:
            row_tile = _TARGET_BLOCK_BYTES // (_LANES * itemsize)
        # Enforce dtype-native sublane multiple; don't exceed the (padded) array.
        row_tile = _round_up(max(int(row_tile), pack), pack)
        row_tile = min(row_tile, _round_up(rows, pack))

        slab = flat.reshape(rows, _LANES)
        grid = (pl.cdiv(rows, row_tile),)        # ragged last block is masked
        block = (row_tile, _LANES)
        index_map = lambda i: (i, 0)
        out_struct = jax.ShapeDtypeStruct((rows, _LANES), x.dtype)
    else:
        # Rare unaligned path: single sublane row tiled along the lane axis.
        # No pad / slice in HBM; the last block is masked by Pallas.
        lane_tile = min(_UNALIGNED_LANE_TILE, _round_up(total, _LANES))
        slab = flat.reshape(1, total)
        grid = (pl.cdiv(total, lane_tile),)
        block = (1, lane_tile)
        index_map = lambda i: (0, i)
        out_struct = jax.ShapeDtypeStruct((1, total), x.dtype)

    out_slab = pl.pallas_call(
        _copy_kernel,
        out_shape=out_struct,
        grid_spec=pltpu.PrefetchScalarGridSpec(
            num_scalar_prefetch=0,
            grid=grid,
            in_specs=[pl.BlockSpec(block, index_map)],
            out_specs=pl.BlockSpec(block, index_map),
        ),
        compiler_params=pltpu.CompilerParams(
            dimension_semantics=("parallel",),
            vmem_limit_bytes=_VMEM_LIMIT_BYTES,
        ),
    )(slab)

    # Final shape change is metadata-only on the freshly written buffer.
    return out_slab.reshape(out_shape)


if __name__ == "__main__":
    key = jax.random.PRNGKey(0)

    # Main case, matching a typical use: (B, C, H, W) = (2, 4, 16, 16),
    # Reshape(2, -1, 16) merges channel and height dims like torch .view.
    x = jax.random.normal(key, (2, 4, 16, 16), dtype=jnp.float32)
    y = pallas_reshape(x, (2, -1, 16))
    y = jax.block_until_ready(y)
    y_ref = x.reshape((2, 64, 16))
    assert y.shape == (2, 64, 16), y.shape
    assert y.dtype == x.dtype
    assert bool(jnp.array_equal(y, y_ref))

    # Ragged row-grid path: rows=24 with row_tile=16 -> partial last block.
    k1, k2 = jax.random.split(key)
    x2 = jax.random.normal(k1, (3, 4, 16, 16), dtype=jnp.float32)
    y2 = jax.block_until_ready(pallas_reshape(x2, (-1, 16), row_tile=16))
    assert bool(jnp.array_equal(y2, x2.reshape((-1, 16))))

    # Unaligned-total path: 3*5*7 = 105 elements (not a multiple of 128).
    x3 = jax.random.normal(k2, (3, 5, 7), dtype=jnp.float32)
    y3 = jax.block_until_ready(pallas_reshape(x3, (5, 21)))
    assert bool(jnp.array_equal(y3, x3.reshape((5, 21))))

    print("KERNEL_OK")
</pallas_src>

<mosaic_0001>
module attributes {stable_mosaic.version = 11 : i64} {
  func.func @_copy_kernel(%arg0: i32, %arg1: memref<16x128xf32, #tpu.memory_space<vmem>>, %arg2: memref<16x128xf32, #tpu.memory_space<vmem>>) attributes {dimension_semantics = [#tpu.dimension_semantics<parallel>], iteration_bounds = array<i64: 1>, scalar_prefetch = 0 : i64, scratch_operands = 0 : i64, tpu.core_type = #tpu.core_type<tc>, window_params = [{transform_indices = @transform_0, window_bounds = array<i64: 16, 128>}, {transform_indices = @transform_1, window_bounds = array<i64: 16, 128>}]} {
    %c0 = arith.constant 0 : index
    %c0_0 = arith.constant 0 : index
    %0 = vector.load %arg1[%c0, %c0_0] : memref<16x128xf32, #tpu.memory_space<vmem>>, vector<16x128xf32>
    %c0_1 = arith.constant 0 : index
    %c0_2 = arith.constant 0 : index
    %1 = vector.load %arg2[%c0_1, %c0_2] : memref<16x128xf32, #tpu.memory_space<vmem>>, vector<16x128xf32>
    tpu.vector_store %arg2[%c0_1, %c0_2], %0 {strides = array<i32>} : memref<16x128xf32, #tpu.memory_space<vmem>>, vector<16x128xf32>,
    return
  }
  func.func @transform_0(%arg0: i32) -> (i32, i32) {
    %c0_i32 = arith.constant 0 : i32
    %c0_i32_0 = arith.constant 0 : i32
    return %arg0, %c0_i32 : i32, i32
  }
  func.func @transform_1(%arg0: i32) -> (i32, i32) {
    %c0_i32 = arith.constant 0 : i32
    %c0_i32_0 = arith.constant 0 : i32
    return %arg0, %c0_i32 : i32, i32
  }
}

</mosaic_0001>

<llo_original>
// kernel: tpu_custom_call.1
$region0: #{tpu_custom_call.1}
  #allocation0 [shape = 'u32[]', space=smem, size = 0x4, offset = 0x4, fixed_abs, tag = 'smem constant byte address 0x4 - core index']
  #allocation1 [shape = 'u32[144,128]{1,0:T(1,128)}', space=vmem, size = 0x12000, scoped, tag = 'internal scratch']
  %s0 = inlined_call_operand.hbm [shape: f32[16,128], index: 0, kind: input, shape index: {}]
  %s1 = inlined_call_operand.hbm [shape: f32[16,128], index: 1, kind: output, shape index: {}]
  %s2 = sld [smem:[#allocation0]]
  $region18: #{tpu_custom_call.1} parent=0
    _
  %s4 = ssub.s32 1, %s2
  %s5 = scalar_select 0, %s4, %s2
  $region1: #{tpu_custom_call.1} parent=0
    #allocation2 [shape = 'u8[8192]{0}', space=vmem, size = 0x2000, scoped, tag = 'input window, operand 0, single buffered']
    #allocation3 [shape = 's32[1]{0}', space=sflag, size = 0x4, scoped, tag = 'scoped memory for tpu_custom_call.1']
    #allocation4 [shape = 's32[1]{0}', space=sflag, size = 0x4, scoped, tag = 'scoped memory for tpu_custom_call.1']
    #allocation5 [shape = 'u8[8192]{0}', space=vmem, size = 0x2000, scoped, tag = 'output window, operand 0, single buffered']
    %6 = vsyncpa [#allocation3], 0
    %7 = vsyncpa [#allocation4], 0
    // Predicated region
    $region2: #{tpu_custom_call.1} parent=1 // pred_check
      _
    $region3: #{tpu_custom_call.1} parent=1 // pred_check_branch
      %9 = sbr.rel (0) target = $region5
    $region4: #{tpu_custom_call.1} parent=1 // pred_region
      %s11 = ssub.s32 256, 256
      %12 = vsyncadd [#allocation3], %s11
      %s13 = sshll.u32 [#allocation2], 4
      %s14 = int_to_ptr.vmem [resolvable:$true] %s13
      %19 = dma.hbm_to_vmem [thread:$0]  %s0, 256, %s14, [#allocation3], 128, 128, 8
    $region5: #{tpu_custom_call.1} parent=1 // pred_fallthru
      _
    // Predicated region
    $region6: #{tpu_custom_call.1} parent=1 // pred_check
      _
    $region7: #{tpu_custom_call.1} parent=1 // pred_check_branch
      %21 = sbr.rel (0) target = $region9
    $region8: #{tpu_custom_call.1} parent=1 // pred_region
      %22 = dma.done [#allocation3], 256
    $region9: #{tpu_custom_call.1} parent=1 // pred_fallthru
      _
    %v23 = vld [vmem:[#allocation2] sm:$0xff]
    %v24 = vld [vmem:[#allocation2 + $0x8] sm:$0xff]
    %25 = vst [vmem:[#allocation5] sm:$0xff] %v23
    %26 = vst [vmem:[#allocation5 + $0x8] sm:$0xff] %v24
    // Predicated region
    $region10: #{tpu_custom_call.1} parent=1 // pred_check
      _
    $region11: #{tpu_custom_call.1} parent=1 // pred_check_branch
      %28 = sbr.rel (0) target = $region13
    $region12: #{tpu_custom_call.1} parent=1 // pred_region
      %s30 = ssub.s32 256, 256
      %31 = vsyncadd [#allocation4], %s30
      %s32 = sshll.u32 [#allocation5], 4
      %s33 = int_to_ptr.vmem [resolvable:$true] %s32
      %38 = dma.vmem_to_hbm [thread:$0]  %s33, 256, %s1, [#allocation4], 128, 128, 8
    $region13: #{tpu_custom_call.1} parent=1 // pred_fallthru
      _
    // Predicated region
    $region14: #{tpu_custom_call.1} parent=1 // pred_check
      _
    $region15: #{tpu_custom_call.1} parent=1 // pred_check_branch
      %40 = sbr.rel (0) target = $region17
    $region16: #{tpu_custom_call.1} parent=1 // pred_region
      %41 = dma.done [#allocation4], 256
    $region17: #{tpu_custom_call.1} parent=1 // pred_fallthru
      _
    %42 = vsyncpa [#allocation3], 1
    %43 = vsyncpa [#allocation4], 1

</llo_original>
